<compile_context>
chip_gen: v5e
topology: v5e:2x2
jax: 0.10.0
libtpu: 0.0.40
codegen_flags: <defaults>
</compile_context>

<pallas_src>
import jax
import jax.numpy as jnp
from jax.experimental import pallas as pl
from jax.experimental.pallas import tpu as pltpu

N_PAD = 128        # lane-dense output width; real columns live in [:action_dims]
NEG_BIG = -1.0e30  # "minus infinity" bias for padded output columns (exp -> exactly 0)


def simple_gram_kernel(x_ref, w_ref, b_ref, out_ref):
    """x_ref  : (TM, K_PAD)     lane-dense activation tile (K zero-padded)
       w_ref  : (K_PAD, N_PAD)  zero-padded weight slab (grid-invariant)
       b_ref  : (1, N_PAD)      bias, NEG_BIG in the padded columns (grid-invariant)
       out_ref: (TM, N_PAD)     softmax probs; padded columns are exactly 0."""
    logits = jnp.dot(x_ref[...], w_ref[...],
                     preferred_element_type=jnp.float32) + b_ref[...]
    # numerically-stable softmax over the lane-dense last dim
    m = jnp.max(logits, axis=-1, keepdims=True)
    e = jnp.exp(logits - m)                       # padded cols underflow to 0
    denom = jnp.sum(e, axis=-1, keepdims=True)
    # Exact normalization (approx reciprocal broke sum(probs)==1 previously).
    out_ref[...] = (e / denom).astype(out_ref.dtype)


def _round_up(x, m):
    return ((x + m - 1) // m) * m


def _pick_batch_tile(batch, k_pad):
    """Batch tile (multiple of 8) from a VMEM budget safe on v5e/v6e/v7x default
    scoped limits.  Gives >=2 tiles for mid-size batches so both v7x TCs run."""
    row_bytes = 2 * (k_pad + N_PAD) * 4           # double-buffered x + out (f32)
    budget = 12 * 1024 * 1024                     # < v5e's 16 MiB default scoped VMEM
    tm_cap = max(8, min(4096, (budget // row_bytes) // 8 * 8))
    b8 = _round_up(batch, 8)
    if b8 <= 8:
        return 8
    if b8 <= 2 * tm_cap:
        return min(tm_cap, _round_up(pl.cdiv(b8, 2), 8))   # exactly 2 tiles
    return tm_cap


def simple_gram_forward(action_sequence, weight, bias, n, action_dims,
                        compute_dtype=jnp.float32):
    """action_sequence: (seq, batch, action_dims) float32, seq <= n.
    weight: (n*action_dims, action_dims)  (PyTorch weight.T, i.e. (in, out)).
    bias:   (action_dims,).
    Returns softmax probabilities of shape (batch, action_dims)."""
    seq, batch, ad = action_sequence.shape
    assert ad == action_dims
    assert seq <= n, "SimpleGram expects at most n timesteps"

    k_real = seq * action_dims                    # only real timesteps contribute
    k_pad = max(128, _round_up(k_real, 128))      # lane-dense K for one clean MXU op

    # ---- weight / bias prep (tiny; constant-folded under jit) ----
    # Weight rows for timesteps >= seq would multiply zero activations in the
    # PyTorch preprocess; they are simply omitted (left as zero rows).
    w_pad = jnp.zeros((k_pad, N_PAD), jnp.float32)
    w_pad = w_pad.at[:k_real, :action_dims].set(weight.astype(jnp.float32)[:k_real, :])
    b_pad = jnp.full((1, N_PAD), NEG_BIG, jnp.float32)
    b_pad = b_pad.at[0, :action_dims].set(bias.astype(jnp.float32))

    # ---- lane-dense activation: (seq, batch, ad) -> (batch, seq*ad) -> pad K ----
    x_flat = jnp.transpose(action_sequence.astype(jnp.float32),
                           (1, 0, 2)).reshape(batch, k_real)
    x_flat = jnp.pad(x_flat, ((0, 0), (0, k_pad - k_real)))

    # ---- batch tiling ----
    tm = _pick_batch_tile(batch, k_pad)
    batch_p = pl.cdiv(batch, tm) * tm
    if batch_p != batch:
        x_flat = jnp.pad(x_flat, ((0, batch_p - batch), (0, 0)))

    probs_padded = pl.pallas_call(
        simple_gram_kernel,
        out_shape=jax.ShapeDtypeStruct((batch_p, N_PAD), jnp.float32),
        grid=(batch_p // tm,),
        in_specs=[
            pl.BlockSpec((tm, k_pad), lambda i: (i, 0)),
            # weight / bias are grid-invariant (could be single-buffered; at
            # 128 KiB the second buffer is negligible, so left at the default).
            pl.BlockSpec((k_pad, N_PAD), lambda i: (0, 0)),
            pl.BlockSpec((1, N_PAD), lambda i: (0, 0)),
        ],
        out_specs=pl.BlockSpec((tm, N_PAD), lambda i: (i, 0)),
        compiler_params=pltpu.CompilerParams(
            dimension_semantics=("parallel",)),
    )(x_flat.astype(compute_dtype), w_pad.astype(compute_dtype), b_pad)

    # TODO(synk): torch.distributions.Categorical is just a wrapper; we return probs.
    return probs_padded[:batch, :action_dims]


def init_params(key, n, action_dims):
    """Deterministic init matching nn.Linear(action_dims*n, action_dims) shapes.
    PyTorch stores weight as (out, in); we store it transposed as (in, out)."""
    in_feat = n * action_dims
    kw, kb = jax.random.split(key)
    bound = 1.0 / jnp.sqrt(in_feat)  # PyTorch default uniform bound
    weight = jax.random.uniform(kw, (in_feat, action_dims),
                                minval=-bound, maxval=bound, dtype=jnp.float32)
    bias = jax.random.uniform(kb, (action_dims,),
                              minval=-bound, maxval=bound, dtype=jnp.float32)
    return weight, bias


if __name__ == "__main__":
    key = jax.random.PRNGKey(0)
    k_in, k_par = jax.random.split(key)

    action_dims = 4
    n = 8
    batch = 2
    seq = 6  # < n: PyTorch zero-pads; here the dead timesteps are simply skipped

    action_sequence = jax.random.normal(
        k_in, (seq, batch, action_dims), dtype=jnp.float32)
    weight, bias = init_params(k_par, n, action_dims)

    probs = simple_gram_forward(action_sequence, weight, bias, n, action_dims)
    probs = jax.block_until_ready(probs)

    # pure-JAX reference of the original forward (pad -> permute -> flatten -> linear -> softmax)
    pad = jnp.zeros((n - seq, batch, action_dims), jnp.float32)
    x_flat_ref = jnp.transpose(jnp.concatenate([action_sequence, pad], axis=0),
                               (1, 0, 2)).reshape(batch, n * action_dims)
    ref = jax.nn.softmax(x_flat_ref @ weight + bias, axis=-1)

    assert probs.shape == (batch, action_dims)
    assert jnp.allclose(jnp.sum(probs, axis=-1), 1.0, atol=1e-3)
    assert jnp.allclose(probs, ref, atol=2e-3, rtol=2e-3)

    print("KERNEL_OK")
</pallas_src>

<mosaic_0001>
module attributes {stable_mosaic.version = 11 : i64} {
  func.func @simple_gram_kernel(%arg0: i32, %arg1: memref<8x128xf32, #tpu.memory_space<vmem>>, %arg2: memref<128x128xf32, #tpu.memory_space<vmem>>, %arg3: memref<1x128xf32, #tpu.memory_space<vmem>>, %arg4: memref<8x128xf32, #tpu.memory_space<vmem>>) attributes {dimension_semantics = [#tpu.dimension_semantics<parallel>], iteration_bounds = array<i64: 1>, scalar_prefetch = 0 : i64, scratch_operands = 0 : i64, tpu.core_type = #tpu.core_type<tc>, window_params = [{transform_indices = @transform_0, window_bounds = array<i64: 8, 128>}, {pipeline_mode = #tpu.pipeline_mode<synchronous>, transform_indices = @transform_1, window_bounds = array<i64: 128, 128>}, {pipeline_mode = #tpu.pipeline_mode<synchronous>, transform_indices = @transform_2, window_bounds = array<i64: 1, 128>}, {transform_indices = @transform_3, window_bounds = array<i64: 8, 128>}]} {
    %c0 = arith.constant 0 : index
    %c0_0 = arith.constant 0 : index
    %0 = vector.load %arg1[%c0, %c0_0] : memref<8x128xf32, #tpu.memory_space<vmem>>, vector<8x128xf32>
    %c0_1 = arith.constant 0 : index
    %c0_2 = arith.constant 0 : index
    %1 = vector.load %arg2[%c0_1, %c0_2] : memref<128x128xf32, #tpu.memory_space<vmem>>, vector<128x128xf32>
    %cst = arith.constant dense<0.000000e+00> : vector<8x128xf32>
    %2 = tpu.matmul %0, %1, %cst {dimension_numbers = #tpu.dot_dimension_numbers<[1], [0], [0], [1], [0, 0, 1, 1], [], []>} : vector<8x128xf32>, vector<128x128xf32>, vector<8x128xf32> -> vector<8x128xf32>
    %c0_3 = arith.constant 0 : index
    %c0_4 = arith.constant 0 : index
    %3 = vector.load %arg3[%c0_3, %c0_4] : memref<1x128xf32, #tpu.memory_space<vmem>>, vector<1x128xf32>
    %4 = vector.broadcast %3 : vector<1x128xf32> to vector<8x128xf32>
    %5 = arith.addf %2, %4 : vector<8x128xf32>
    %cst_5 = arith.constant dense<0xFF800000> : vector<8xf32>
    %6 = vector.multi_reduction <maximumf>, %5, %cst_5 [1] : vector<8x128xf32> to vector<8xf32>
    %7 = vector.shape_cast %6 : vector<8xf32> to vector<8x1xf32>
    %8 = vector.broadcast %7 : vector<8x1xf32> to vector<8x128xf32>
    %9 = arith.subf %5, %8 : vector<8x128xf32>
    %10 = math.exp %9 : vector<8x128xf32>
    %cst_6 = arith.constant dense<0.000000e+00> : vector<8xf32>
    %11 = vector.multi_reduction <add>, %10, %cst_6 [1] : vector<8x128xf32> to vector<8xf32>
    %12 = vector.shape_cast %11 : vector<8xf32> to vector<8x1xf32>
    %13 = vector.broadcast %12 : vector<8x1xf32> to vector<8x128xf32>
    %14 = arith.divf %10, %13 : vector<8x128xf32>
    %c0_7 = arith.constant 0 : index
    %c0_8 = arith.constant 0 : index
    %15 = vector.load %arg4[%c0_7, %c0_8] : memref<8x128xf32, #tpu.memory_space<vmem>>, vector<8x128xf32>
    tpu.vector_store %arg4[%c0_7, %c0_8], %14 {strides = array<i32>} : memref<8x128xf32, #tpu.memory_space<vmem>>, vector<8x128xf32>,
    return
  }
  func.func @transform_0(%arg0: i32) -> (i32, i32) {
    %c0_i32 = arith.constant 0 : i32
    %c0_i32_0 = arith.constant 0 : i32
    return %arg0, %c0_i32 : i32, i32
  }
  func.func @transform_1(%arg0: i32) -> (i32, i32) {
    %c0_i32 = arith.constant 0 : i32
    %c0_i32_0 = arith.constant 0 : i32
    %c0_i32_1 = arith.constant 0 : i32
    return %c0_i32, %c0_i32_0 : i32, i32
  }
  func.func @transform_2(%arg0: i32) -> (i32, i32) {
    %c0_i32 = arith.constant 0 : i32
    %c0_i32_0 = arith.constant 0 : i32
    %c0_i32_1 = arith.constant 0 : i32
    return %c0_i32, %c0_i32_0 : i32, i32
  }
  func.func @transform_3(%arg0: i32) -> (i32, i32) {
    %c0_i32 = arith.constant 0 : i32
    %c0_i32_0 = arith.constant 0 : i32
    return %arg0, %c0_i32 : i32, i32
  }
}

</mosaic_0001>

<llo_original>
// kernel: tpu_custom_call.1
$region0: #{tpu_custom_call.1}
  #allocation0 [shape = 'u32[]', space=smem, size = 0x4, offset = 0x4, fixed_abs, tag = 'smem constant byte address 0x4 - core index']
  #allocation1 [shape = 'u32[72,128]{1,0:T(1,128)}', space=vmem, size = 0x9000, scoped, tag = 'internal scratch']
  %s0 = inlined_call_operand.hbm [shape: f32[8,128], index: 0, kind: input, shape index: {}]
  %s1 = inlined_call_operand.hbm [shape: f32[128,128], index: 1, kind: input, shape index: {}]
  %s2 = inlined_call_operand.vmem [shape: f32[1,128], index: 2, kind: input, shape index: {}]
  %s3 = inlined_call_operand.hbm [shape: f32[8,128], index: 3, kind: output, shape index: {}]
  %s4 = sld [smem:[#allocation0]]
  $region30: #{tpu_custom_call.1} parent=0
    _
  %s6 = ssub.s32 1, %s4
  %s7 = scalar_select 0, %s6, %s4
  $region1: #{tpu_custom_call.1} parent=0
    #allocation2 [shape = 'u8[4096]{0}', space=vmem, size = 0x1000, scoped, tag = 'input window, operand 0, single buffered']
    #allocation3 [shape = 's32[1]{0}', space=sflag, size = 0x4, scoped, tag = 'scoped memory for tpu_custom_call.1']
    #allocation4 [shape = 's32[1]{0}', space=sflag, size = 0x4, scoped, tag = 'scoped memory for tpu_custom_call.1']
    #allocation5 [shape = 'u8[65536]{0}', space=vmem, size = 0x10000, scoped, tag = 'input window, operand 1, single buffered']
    #allocation6 [shape = 's32[1]{0}', space=sflag, size = 0x4, scoped, tag = 'scoped memory for tpu_custom_call.1']
    #allocation7 [shape = 'u8[4096]{0}', space=vmem, size = 0x1000, scoped, tag = 'output window, operand 0, single buffered']
    %8 = vsyncpa [#allocation3], 0
    %9 = vsyncpa [#allocation6], 0
    %10 = vsyncpa [#allocation4], 0
    // Predicated region
    $region2: #{tpu_custom_call.1} parent=1 // pred_check
      _
    $region3: #{tpu_custom_call.1} parent=1 // pred_check_branch
      %12 = sbr.rel (0) target = $region5
    $region4: #{tpu_custom_call.1} parent=1 // pred_region
      %14 = vsyncadd [#allocation3], 0
      %s16 = sshll.u32 %s0, 4
      %s17 = int_to_ptr.hbm [resolvable:$true] %s16
      %s18 = sshll.u32 [#allocation2], 4
      %s19 = int_to_ptr.vmem [resolvable:$true] %s18
      %21 = dma.hbm_to_vmem [thread:$0]  %s17, 128, %s19, [#allocation3]
    $region5: #{tpu_custom_call.1} parent=1 // pred_fallthru
      _
    // Predicated region
    $region6: #{tpu_custom_call.1} parent=1 // pred_check
      _
    $region7: #{tpu_custom_call.1} parent=1 // pred_check_branch
      %23 = sbr.rel (0) target = $region9
    $region8: #{tpu_custom_call.1} parent=1 // pred_region
      %25 = vsyncadd [#allocation6], 0
      %s26 = sshll.u32 %s1, 4
      %s27 = int_to_ptr.hbm [resolvable:$true] %s26
      %s28 = sshll.u32 [#allocation5], 4
      %s29 = int_to_ptr.vmem [resolvable:$true] %s28
      %34 = dma.hbm_to_vmem [thread:$0]  %s27, 2048, %s29, [#allocation6], 128, 128, 8
    $region9: #{tpu_custom_call.1} parent=1 // pred_fallthru
      _
    // Predicated region
    $region10: #{tpu_custom_call.1} parent=1 // pred_check
      _
    $region11: #{tpu_custom_call.1} parent=1 // pred_check_branch
      %36 = sbr.rel (0) target = $region13
    $region12: #{tpu_custom_call.1} parent=1 // pred_region
      _
    $region13: #{tpu_custom_call.1} parent=1 // pred_fallthru
      _
    // Predicated region
    $region14: #{tpu_custom_call.1} parent=1 // pred_check
      _
    $region15: #{tpu_custom_call.1} parent=1 // pred_check_branch
      %38 = sbr.rel (0) target = $region17
    $region16: #{tpu_custom_call.1} parent=1 // pred_region
      %40 = dma.done [#allocation3], 128
    $region17: #{tpu_custom_call.1} parent=1 // pred_fallthru
      _
    // Predicated region
    $region18: #{tpu_custom_call.1} parent=1 // pred_check
      _
    $region19: #{tpu_custom_call.1} parent=1 // pred_check_branch
      %42 = sbr.rel (0) target = $region21
    $region20: #{tpu_custom_call.1} parent=1 // pred_region
      %44 = dma.done [#allocation6], 2048
    $region21: #{tpu_custom_call.1} parent=1 // pred_fallthru
      _
    %v45 = vld [vmem:[#allocation2] sm:$0xff]
    %v46 = vld [vmem:[#allocation5] sm:$0xff]
    %v47 = vld [vmem:[#allocation5 + $0x8] sm:$0xff]
    %v48 = vld [vmem:[#allocation5 + $0x10] sm:$0xff]
    %v49 = vld [vmem:[#allocation5 + $0x18] sm:$0xff]
    %v50 = vld [vmem:[#allocation5 + $0x20] sm:$0xff]
    %v51 = vld [vmem:[#allocation5 + $0x28] sm:$0xff]
    %v52 = vld [vmem:[#allocation5 + $0x30] sm:$0xff]
    %v53 = vld [vmem:[#allocation5 + $0x38] sm:$0xff]
    %v54 = vld [vmem:[#allocation5 + $0x40] sm:$0xff]
    %v55 = vld [vmem:[#allocation5 + $0x48] sm:$0xff]
    %v56 = vld [vmem:[#allocation5 + $0x50] sm:$0xff]
    %v57 = vld [vmem:[#allocation5 + $0x58] sm:$0xff]
    %v58 = vld [vmem:[#allocation5 + $0x60] sm:$0xff]
    %v59 = vld [vmem:[#allocation5 + $0x68] sm:$0xff]
    %v60 = vld [vmem:[#allocation5 + $0x70] sm:$0xff]
    %v61 = vld [vmem:[#allocation5 + $0x78] sm:$0xff]
    %v62 = vld [vmem:[%s2] sm:$0x1]
    %v64 = vperm.slane %v62, 0
    %66 = vmatpush.msra.mxu0 %v61
    %67 = vmatpush.msra.mxu0 %v60
    %68 = vmatpush.msra.mxu0 %v59
    %69 = vmatpush.msra.mxu0 %v58
    %70 = vmatpush.msra.mxu0 %v57
    %71 = vmatpush.msra.mxu0 %v56
    %72 = vmatpush.msra.mxu0 %v55
    %73 = vmatpush.msra.mxu0 %v54
    %74 = vmatpush.msra.mxu0 %v53
    %75 = vmatpush.msra.mxu0 %v52
    %76 = vmatpush.msra.mxu0 %v51
    %77 = vmatpush.msra.mxu0 %v50
    %78 = vmatpush.msra.mxu0 %v49
    %79 = vmatpush.msra.mxu0 %v48
    %80 = vmatpush.msra.mxu0 %v47
    %81 = vmatpush.msra.mxu0 %v46
    %82 = vmatmul.f32.gmra.mxu0 %v45
    %v83 = vpop.f32.mrf.mxu0
    %v84 = vadd.f32 %v64, %v83
    %85 = vdwg.mxu0
    %86 = vmax.xlane.f32.xlu0 %v84
    %v87 = vpop.xlane.xlu0 %86
    %v88 = vsub.f32 %v84, %v87
    %v89 = vmul.f32 %v88, 1.442695
    %v90 = vpow.pop %v89
    %91 = vadd.xlane.f32.xlu0 %v90
    %v92 = vpop.xlane.xlu0 %91
    %v93 = vrcp.pop %v92
    %v94 = vmul.f32 %v92, %v93
    %v95 = vsub.f32 1.0, %v94
    %v96 = vmul.f32 %v93, %v95
    %v97 = vadd.f32 %v93, %v96
    %vm98 = vweird.f32 %v92
    %vm99 = vweird.f32 %v93
    %vm100 = vmor %vm98, %vm99
    %v101 = vsel %vm100, %v93, %v97
    %v102 = vand.u32 2147483647, %v92
    %vm103 = vcmp.eq.f32.partialorder %v102, 8.507059e+37
    %v104 = vand.u32 %v92, 2147483648
    %v105 = vor.u32 1.1754944e-38, %v104
    %v106 = vsel %vm103, %v105, %v101
    %v107 = vmul.f32 %v90, %v106
    %108 = vst [vmem:[#allocation7] sm:$0xff] %v107
    // Predicated region
    $region22: #{tpu_custom_call.1} parent=1 // pred_check
      _
    $region23: #{tpu_custom_call.1} parent=1 // pred_check_branch
      %110 = sbr.rel (0) target = $region25
    $region24: #{tpu_custom_call.1} parent=1 // pred_region
      %112 = vsyncadd [#allocation4], 0
      %s114 = sshll.u32 [#allocation7], 4
      %s115 = int_to_ptr.vmem [resolvable:$true] %s114
      %s116 = sshll.u32 %s3, 4
      %s117 = int_to_ptr.hbm [resolvable:$true] %s116
      %119 = dma.vmem_to_hbm [thread:$0]  %s115, 128, %s117, [#allocation4]
    $region25: #{tpu_custom_call.1} parent=1 // pred_fallthru
      _
    // Predicated region
    $region26: #{tpu_custom_call.1} parent=1 // pred_check
      _
    $region27: #{tpu_custom_call.1} parent=1 // pred_check_branch
      %121 = sbr.rel (0) target = $region29
    $region28: #{tpu_custom_call.1} parent=1 // pred_region
      %123 = dma.done [#allocation4], 128
    $region29: #{tpu_custom_call.1} parent=1 // pred_fallthru
      _
    %124 = vsyncpa [#allocation3], 1
    %125 = vsyncpa [#allocation6], 1
    %126 = vsyncpa [#allocation4], 1

</llo_original>
